<compile_context>
chip_gen: v7x
topology: tpu7x:2x2x1
jax: 0.10.0
libtpu: 0.0.40
codegen_flags: <defaults>
</compile_context>

<pallas_src>
import jax
import jax.numpy as jnp
from jax.experimental import pallas as pl
from jax.experimental.pallas import tpu as pltpu

DROP_P = 0.2
KEEP_SCALE = 1.0 / (1.0 - DROP_P)
# keep iff bits >= DROP_P * 2^32  (keep probability ~0.8, <1e-9 bias)
DROP_THRESHOLD_U32 = int(round(DROP_P * (1 << 32)))

N_HEAD = 4
BATCH_SIZE_CFG = 32                 # from the reference script (only sets n_embed)
N_EMBED = N_HEAD * BATCH_SIZE_CFG   # 128
HIDDEN = 4 * N_EMBED                # 512


def _round_up(x, m):
    return ((x + m - 1) // m) * m


def ffn_kernel(x_ref, bits_ref, w1_ref, b1_ref, w2_ref, b2_ref, o_ref):
    # x_ref: (TM, C) bf16, w1_ref: (C, H) bf16, b1_ref: (1, H) f32,
    # w2_ref: (H, C) bf16, b2_ref: (1, C) f32, bits_ref: (TM, C) u32.
    # First linear (bf16 MXU, f32 accumulate) + bias + ReLU in f32.
    h = jnp.dot(x_ref[...], w1_ref[...], preferred_element_type=jnp.float32)
    h = jnp.maximum(h + b1_ref[...], 0.0)

    # Second linear (cast hidden to bf16 for the MXU, accumulate f32).
    y = jnp.dot(h.astype(jnp.bfloat16), w2_ref[...],
                preferred_element_type=jnp.float32)
    y = y + b2_ref[...]

    # Inverted dropout: single integer-threshold compare + select.
    keep = bits_ref[...] >= jnp.uint32(DROP_THRESHOLD_U32)
    o_ref[...] = jnp.where(keep, y * jnp.float32(KEEP_SCALE),
                           jnp.float32(0.0)).astype(o_ref.dtype)


def feed_forward(x, w1, b1, w2, b2, key, *, tm=512):
    """x: (B, T, C) float32. Returns (B, T, C) float32 (training-mode dropout)."""
    B, T, C = x.shape
    H = w1.shape[1]
    assert w1.shape == (C, H) and w2.shape == (H, C)
    assert C % 128 == 0 and H % 128 == 0, "lane dims must be multiples of 128"
    M = B * T

    # Pick the effective row tile: as large as requested, shrink for tiny inputs.
    m_round = _round_up(M, 8)
    if tm >= m_round:
        tm_eff = m_round                       # single tile == full (padded) array
    else:
        tm_eff = max(16, (tm // 16) * 16)      # multiple of 16 for bf16 sublanes
    M_pad = _round_up(M, tm_eff)
    grid = (M_pad // tm_eff,)

    # Inputs: activations + weights in bf16 (halve DMA, MXU-native), biases f32.
    x2 = x.reshape(M, C).astype(jnp.bfloat16)
    if M_pad != M:
        x2 = jnp.pad(x2, ((0, M_pad - M), (0, 0)))
    w1b = w1.astype(jnp.bfloat16)
    w2b = w2.astype(jnp.bfloat16)
    b1r = b1.reshape(1, H).astype(jnp.float32)
    b2r = b2.reshape(1, C).astype(jnp.float32)

    # Host-generated dropout bits (portable; no TPU-only PRNG primitives needed).
    bits = jax.random.bits(key, (M_pad, C), dtype=jnp.uint32)

    # Rough VMEM footprint (double-buffered streams + resident weights + hidden).
    est_vmem = (
        2 * tm_eff * C * 2          # x tiles (bf16)
        + 2 * tm_eff * C * 4        # bits tiles (u32)
        + 2 * tm_eff * C * 4        # out tiles (f32)
        + 2 * (C * H * 2 + H * C * 2)   # weights (bf16, conservatively x2)
        + 2 * (H * 4 + C * 4)       # biases
        + 2 * tm_eff * H * 4        # hidden intermediate + temporaries (f32)
    )
    vmem_limit = int(min(max(2 * est_vmem, 32 * 1024 * 1024), 48 * 1024 * 1024))

    flops = 2 * M_pad * (C * H + H * C)
    bytes_accessed = (
        M_pad * C * (2 + 4 + 4)     # x (bf16) + bits (u32) + out (f32)
        + C * H * 2 + H * C * 2     # weights
        + (H + C) * 4               # biases
    )

    out2 = pl.pallas_call(
        ffn_kernel,
        out_shape=jax.ShapeDtypeStruct((M_pad, C), x.dtype),
        grid_spec=pltpu.PrefetchScalarGridSpec(
            num_scalar_prefetch=0,
            grid=grid,
            in_specs=[
                pl.BlockSpec((tm_eff, C), lambda i: (i, 0)),   # x tile
                pl.BlockSpec((tm_eff, C), lambda i: (i, 0)),   # dropout bits tile
                pl.BlockSpec((C, H), lambda i: (0, 0)),        # w1 (resident)
                pl.BlockSpec((1, H), lambda i: (0, 0)),        # b1
                pl.BlockSpec((H, C), lambda i: (0, 0)),        # w2 (resident)
                pl.BlockSpec((1, C), lambda i: (0, 0)),        # b2
            ],
            out_specs=pl.BlockSpec((tm_eff, C), lambda i: (i, 0)),
        ),
        compiler_params=pltpu.CompilerParams(
            dimension_semantics=("parallel",),   # rows independent -> megacore/v7x
            vmem_limit_bytes=vmem_limit,
        ),
        cost_estimate=pl.CostEstimate(
            flops=flops, transcendentals=0, bytes_accessed=bytes_accessed),
    )(x2, bits, w1b, b1r, w2b, b2r)

    return out2[:M].reshape(B, T, C)


def init_params(key, n_embed, hidden):
    # Deterministic init mimicking nn.Linear: U(-1/sqrt(fan_in), 1/sqrt(fan_in)).
    k1, k2, k3, k4 = jax.random.split(key, 4)
    lim1 = 1.0 / jnp.sqrt(n_embed)
    lim2 = 1.0 / jnp.sqrt(hidden)
    w1 = jax.random.uniform(k1, (n_embed, hidden), jnp.float32, -lim1, lim1)
    b1 = jax.random.uniform(k2, (hidden,), jnp.float32, -lim1, lim1)
    w2 = jax.random.uniform(k3, (hidden, n_embed), jnp.float32, -lim2, lim2)
    b2 = jax.random.uniform(k4, (n_embed,), jnp.float32, -lim2, lim2)
    return w1, b1, w2, b2


if __name__ == "__main__":
    key = jax.random.PRNGKey(0)
    kx, kp, kd = jax.random.split(key, 3)

    B, T, C = 2, 8, N_EMBED           # small batch / seq; C = n_embed = 128
    x = jax.random.normal(kx, (B, T, C), jnp.float32)
    w1, b1, w2, b2 = init_params(kp, C, HIDDEN)

    out = feed_forward(x, w1, b1, w2, b2, kd)
    out = jax.block_until_ready(out)

    assert out.shape == (B, T, C)
    assert out.dtype == jnp.float32
    assert bool(jnp.all(jnp.isfinite(out)))
    print("KERNEL_OK")
</pallas_src>

<mosaic_0001>
module attributes {stable_mosaic.version = 11 : i64} {
  func.func @ffn_kernel(%arg0: i32, %arg1: memref<16x128xbf16, #tpu.memory_space<vmem>>, %arg2: memref<16x128xi32, #tpu.memory_space<vmem>>, %arg3: memref<128x512xbf16, #tpu.memory_space<vmem>>, %arg4: memref<1x512xf32, #tpu.memory_space<vmem>>, %arg5: memref<512x128xbf16, #tpu.memory_space<vmem>>, %arg6: memref<1x128xf32, #tpu.memory_space<vmem>>, %arg7: memref<16x128xf32, #tpu.memory_space<vmem>>) attributes {dimension_semantics = [#tpu.dimension_semantics<parallel>], iteration_bounds = array<i64: 1>, scalar_prefetch = 0 : i64, scratch_operands = 0 : i64, tpu.core_type = #tpu.core_type<tc>, window_params = [{transform_indices = @transform_0, window_bounds = array<i64: 16, 128>}, {transform_indices = @transform_1, window_bounds = array<i64: 16, 128>}, {pipeline_mode = #tpu.pipeline_mode<synchronous>, transform_indices = @transform_2, window_bounds = array<i64: 128, 512>}, {pipeline_mode = #tpu.pipeline_mode<synchronous>, transform_indices = @transform_3, window_bounds = array<i64: 1, 512>}, {pipeline_mode = #tpu.pipeline_mode<synchronous>, transform_indices = @transform_4, window_bounds = array<i64: 512, 128>}, {pipeline_mode = #tpu.pipeline_mode<synchronous>, transform_indices = @transform_5, window_bounds = array<i64: 1, 128>}, {transform_indices = @transform_6, window_bounds = array<i64: 16, 128>}]} {
    %c0 = arith.constant 0 : index
    %c0_0 = arith.constant 0 : index
    %0 = vector.load %arg1[%c0, %c0_0] : memref<16x128xbf16, #tpu.memory_space<vmem>>, vector<16x128xbf16>
    %c0_1 = arith.constant 0 : index
    %c0_2 = arith.constant 0 : index
    %1 = vector.load %arg3[%c0_1, %c0_2] : memref<128x512xbf16, #tpu.memory_space<vmem>>, vector<128x512xbf16>
    %cst = arith.constant dense<0.000000e+00> : vector<16x512xf32>
    %2 = tpu.matmul %0, %1, %cst {dimension_numbers = #tpu.dot_dimension_numbers<[1], [0], [0], [1], [0, 0, 1, 1], [], []>} : vector<16x128xbf16>, vector<128x512xbf16>, vector<16x512xf32> -> vector<16x512xf32>
    %c0_3 = arith.constant 0 : index
    %c0_4 = arith.constant 0 : index
    %3 = vector.load %arg4[%c0_3, %c0_4] : memref<1x512xf32, #tpu.memory_space<vmem>>, vector<1x512xf32>
    %4 = vector.broadcast %3 : vector<1x512xf32> to vector<16x512xf32>
    %5 = arith.addf %2, %4 : vector<16x512xf32>
    %cst_5 = arith.constant 0.000000e+00 : f32
    %6 = vector.broadcast %cst_5 : f32 to vector<16x512xf32>
    %7 = arith.maximumf %5, %6 : vector<16x512xf32>
    %8 = arith.truncf %7 : vector<16x512xf32> to vector<16x512xbf16>
    %c0_6 = arith.constant 0 : index
    %c0_7 = arith.constant 0 : index
    %9 = vector.load %arg5[%c0_6, %c0_7] : memref<512x128xbf16, #tpu.memory_space<vmem>>, vector<512x128xbf16>
    %cst_8 = arith.constant dense<0.000000e+00> : vector<16x128xf32>
    %10 = tpu.matmul %8, %9, %cst_8 {dimension_numbers = #tpu.dot_dimension_numbers<[1], [0], [0], [1], [0, 0, 1, 1], [], []>} : vector<16x512xbf16>, vector<512x128xbf16>, vector<16x128xf32> -> vector<16x128xf32>
    %c0_9 = arith.constant 0 : index
    %c0_10 = arith.constant 0 : index
    %11 = vector.load %arg6[%c0_9, %c0_10] : memref<1x128xf32, #tpu.memory_space<vmem>>, vector<1x128xf32>
    %12 = vector.broadcast %11 : vector<1x128xf32> to vector<16x128xf32>
    %13 = arith.addf %10, %12 : vector<16x128xf32>
    %c0_11 = arith.constant 0 : index
    %c0_12 = arith.constant 0 : index
    %14 = vector.load %arg2[%c0_11, %c0_12] : memref<16x128xi32, #tpu.memory_space<vmem>>, vector<16x128xi32>
    %c858993459_i32 = arith.constant 858993459 : i32
    %15 = vector.broadcast %c858993459_i32 : i32 to vector<16x128xi32>
    %16 = arith.cmpi uge, %14, %15 : vector<16x128xi32>
    %cst_13 = arith.constant 1.250000e+00 : f32
    %17 = vector.broadcast %cst_13 : f32 to vector<16x128xf32>
    %18 = arith.mulf %13, %17 : vector<16x128xf32>
    %cst_14 = arith.constant 0.000000e+00 : f32
    %19 = vector.broadcast %cst_14 : f32 to vector<16x128xf32>
    %20 = arith.select %16, %18, %19 : vector<16x128xi1>, vector<16x128xf32>
    %c0_15 = arith.constant 0 : index
    %c0_16 = arith.constant 0 : index
    %21 = vector.load %arg7[%c0_15, %c0_16] : memref<16x128xf32, #tpu.memory_space<vmem>>, vector<16x128xf32>
    tpu.vector_store %arg7[%c0_15, %c0_16], %20 {strides = array<i32>} : memref<16x128xf32, #tpu.memory_space<vmem>>, vector<16x128xf32>,
    return
  }
  func.func @transform_0(%arg0: i32) -> (i32, i32) {
    %c0_i32 = arith.constant 0 : i32
    %c0_i32_0 = arith.constant 0 : i32
    return %arg0, %c0_i32 : i32, i32
  }
  func.func @transform_1(%arg0: i32) -> (i32, i32) {
    %c0_i32 = arith.constant 0 : i32
    %c0_i32_0 = arith.constant 0 : i32
    return %arg0, %c0_i32 : i32, i32
  }
  func.func @transform_2(%arg0: i32) -> (i32, i32) {
    %c0_i32 = arith.constant 0 : i32
    %c0_i32_0 = arith.constant 0 : i32
    %c0_i32_1 = arith.constant 0 : i32
    return %c0_i32, %c0_i32_0 : i32, i32
  }
  func.func @transform_3(%arg0: i32) -> (i32, i32) {
    %c0_i32 = arith.constant 0 : i32
    %c0_i32_0 = arith.constant 0 : i32
    %c0_i32_1 = arith.constant 0 : i32
    return %c0_i32, %c0_i32_0 : i32, i32
  }
  func.func @transform_4(%arg0: i32) -> (i32, i32) {
    %c0_i32 = arith.constant 0 : i32
    %c0_i32_0 = arith.constant 0 : i32
    %c0_i32_1 = arith.constant 0 : i32
    return %c0_i32, %c0_i32_0 : i32, i32
  }
  func.func @transform_5(%arg0: i32) -> (i32, i32) {
    %c0_i32 = arith.constant 0 : i32
    %c0_i32_0 = arith.constant 0 : i32
    %c0_i32_1 = arith.constant 0 : i32
    return %c0_i32, %c0_i32_0 : i32, i32
  }
  func.func @transform_6(%arg0: i32) -> (i32, i32) {
    %c0_i32 = arith.constant 0 : i32
    %c0_i32_0 = arith.constant 0 : i32
    return %arg0, %c0_i32 : i32, i32
  }
}

</mosaic_0001>

<llo_original>
// kernel: tpu_custom_call.1
$region0: #{tpu_custom_call.1}
  #allocation0 [shape = 'u32[]', space=smem, size = 0x4, offset = 0x4, fixed_abs, tag = 'smem constant byte address 0x4 - core index']
  #allocation1 [shape = 'u32[144,128]{1,0:T(1,128)}', space=vmem, size = 0x12000, scoped, tag = 'internal scratch']
  %s0 = inlined_call_operand.hbm [shape: bf16[16,128], index: 0, kind: input, shape index: {}]
  %s1 = inlined_call_operand.hbm [shape: u32[16,128], index: 1, kind: input, shape index: {}]
  %s2 = inlined_call_operand.hbm [shape: bf16[128,512], index: 2, kind: input, shape index: {}]
  %s3 = inlined_call_operand.vmem [shape: f32[1,512], index: 3, kind: input, shape index: {}]
  %s4 = inlined_call_operand.hbm [shape: bf16[512,128], index: 4, kind: input, shape index: {}]
  %s5 = inlined_call_operand.vmem [shape: f32[1,128], index: 5, kind: input, shape index: {}]
  %s6 = inlined_call_operand.hbm [shape: f32[16,128], index: 6, kind: output, shape index: {}]
  %s7 = sld [smem:[#allocation0]]
  $region50: #{tpu_custom_call.1} parent=0
    _
  %s9 = ssub.s32 1, %s7
  %s10 = scalar_select 0, %s9, %s7
  $region1: #{tpu_custom_call.1} parent=0
    #allocation2 [shape = 'u8[4096]{0}', space=vmem, size = 0x1000, scoped, tag = 'input window, operand 0, single buffered']
    #allocation3 [shape = 's32[1]{0}', space=sflag, size = 0x4, scoped, tag = 'scoped memory for tpu_custom_call.1']
    #allocation4 [shape = 's32[1]{0}', space=sflag, size = 0x4, scoped, tag = 'scoped memory for tpu_custom_call.1']
    #allocation5 [shape = 'u8[8192]{0}', space=vmem, size = 0x2000, scoped, tag = 'input window, operand 1, single buffered']
    #allocation6 [shape = 's32[1]{0}', space=sflag, size = 0x4, scoped, tag = 'scoped memory for tpu_custom_call.1']
    #allocation7 [shape = 'u8[131072]{0}', space=vmem, size = 0x20000, scoped, tag = 'input window, operand 2, single buffered']
    #allocation8 [shape = 'u8[131072]{0}', space=vmem, size = 0x20000, scoped, tag = 'input window, operand 4, single buffered']
    #allocation9 [shape = 's32[1]{0}', space=sflag, size = 0x4, scoped, tag = 'scoped memory for tpu_custom_call.1']
    #allocation10 [shape = 'u8[8192]{0}', space=vmem, size = 0x2000, scoped, tag = 'output window, operand 0, single buffered']
    %11 = vsyncpa [#allocation3], 0
    %12 = vsyncpa [#allocation6], 0
    %13 = vsyncpa [#allocation9], 0
    %14 = vsyncpa [#allocation4], 0
    // Predicated region
    $region2: #{tpu_custom_call.1} parent=1 // pred_check
      _
    $region3: #{tpu_custom_call.1} parent=1 // pred_check_branch
      %16 = sbr.rel (0) target = $region5
    $region4: #{tpu_custom_call.1} parent=1 // pred_region
      %s18 = ssub.s32 128, 128
      %19 = vsyncadd [#allocation3], %s18
      %s20 = sshll.u32 [#allocation2], 4
      %s21 = int_to_ptr.vmem [resolvable:$true] %s20
      %26 = dma.hbm_to_vmem [thread:$0]  %s0, 128, %s21, [#allocation3], 64, 64, 4
    $region5: #{tpu_custom_call.1} parent=1 // pred_fallthru
      _
    // Predicated region
    $region6: #{tpu_custom_call.1} parent=1 // pred_check
      _
    $region7: #{tpu_custom_call.1} parent=1 // pred_check_branch
      %28 = sbr.rel (0) target = $region9
    $region8: #{tpu_custom_call.1} parent=1 // pred_region
      %s30 = ssub.s32 256, 256
      %31 = vsyncadd [#allocation6], %s30
      %s32 = sshll.u32 [#allocation5], 4
      %s33 = int_to_ptr.vmem [resolvable:$true] %s32
      %38 = dma.hbm_to_vmem [thread:$0]  %s1, 256, %s33, [#allocation6], 128, 128, 8
    $region9: #{tpu_custom_call.1} parent=1 // pred_fallthru
      _
    // Predicated region
    $region10: #{tpu_custom_call.1} parent=1 // pred_check
      _
    $region11: #{tpu_custom_call.1} parent=1 // pred_check_branch
      %40 = sbr.rel (0) target = $region13
    $region12: #{tpu_custom_call.1} parent=1 // pred_region
      %s42 = ssub.s32 4096, 4096
      %43 = vsyncadd [#allocation6], %s42
      %s44 = sshll.u32 [#allocation7], 4
      %s45 = int_to_ptr.vmem [resolvable:$true] %s44
      %50 = dma.hbm_to_vmem [thread:$0]  %s2, 4096, %s45, [#allocation6], 256, 256, 16
    $region13: #{tpu_custom_call.1} parent=1 // pred_fallthru
      _
    // Predicated region
    $region14: #{tpu_custom_call.1} parent=1 // pred_check
      _
    $region15: #{tpu_custom_call.1} parent=1 // pred_check_branch
      %52 = sbr.rel (0) target = $region17
    $region16: #{tpu_custom_call.1} parent=1 // pred_region
      _
    $region17: #{tpu_custom_call.1} parent=1 // pred_fallthru
      _
    // Predicated region
    $region18: #{tpu_custom_call.1} parent=1 // pred_check
      _
    $region19: #{tpu_custom_call.1} parent=1 // pred_check_branch
      %54 = sbr.rel (0) target = $region21
    $region20: #{tpu_custom_call.1} parent=1 // pred_region
      %s56 = ssub.s32 4096, 4096
      %57 = vsyncadd [#allocation9], %s56
      %s58 = sshll.u32 [#allocation8], 4
      %s59 = int_to_ptr.vmem [resolvable:$true] %s58
      %64 = dma.hbm_to_vmem [thread:$0]  %s4, 4096, %s59, [#allocation9], 64, 64, 4
    $region21: #{tpu_custom_call.1} parent=1 // pred_fallthru
      _
    // Predicated region
    $region22: #{tpu_custom_call.1} parent=1 // pred_check
      _
    $region23: #{tpu_custom_call.1} parent=1 // pred_check_branch
      %66 = sbr.rel (0) target = $region25
    $region24: #{tpu_custom_call.1} parent=1 // pred_region
      _
    $region25: #{tpu_custom_call.1} parent=1 // pred_fallthru
      _
    // Predicated region
    $region26: #{tpu_custom_call.1} parent=1 // pred_check
      _
    $region27: #{tpu_custom_call.1} parent=1 // pred_check_branch
      %68 = sbr.rel (0) target = $region29
    $region28: #{tpu_custom_call.1} parent=1 // pred_region
      %69 = dma.done [#allocation3], 128
    $region29: #{tpu_custom_call.1} parent=1 // pred_fallthru
      _
    // Predicated region
    $region30: #{tpu_custom_call.1} parent=1 // pred_check
      _
    $region31: #{tpu_custom_call.1} parent=1 // pred_check_branch
      %71 = sbr.rel (0) target = $region33
    $region32: #{tpu_custom_call.1} parent=1 // pred_region
      %72 = dma.done [#allocation6], 256
    $region33: #{tpu_custom_call.1} parent=1 // pred_fallthru
      _
    // Predicated region
    $region34: #{tpu_custom_call.1} parent=1 // pred_check
      _
    $region35: #{tpu_custom_call.1} parent=1 // pred_check_branch
      %74 = sbr.rel (0) target = $region37
    $region36: #{tpu_custom_call.1} parent=1 // pred_region
      %75 = dma.done [#allocation6], 4096
    $region37: #{tpu_custom_call.1} parent=1 // pred_fallthru
      _
    // Predicated region
    $region38: #{tpu_custom_call.1} parent=1 // pred_check
      _
    $region39: #{tpu_custom_call.1} parent=1 // pred_check_branch
      %77 = sbr.rel (0) target = $region41
    $region40: #{tpu_custom_call.1} parent=1 // pred_region
      %78 = dma.done [#allocation9], 4096
    $region41: #{tpu_custom_call.1} parent=1 // pred_fallthru
      _
    %v80 = vld [vmem:[#allocation2] sm:$0xf]
    %v81 = vld [vmem:[#allocation2 + $0x4] sm:$0xf]
    %v82 = vld [vmem:[#allocation7] sm:$0xff]
    %v83 = vld [vmem:[#allocation7 + $0x8] sm:$0xff]
    %v84 = vld [vmem:[#allocation7 + $0x10] sm:$0xff]
    %v85 = vld [vmem:[#allocation7 + $0x18] sm:$0xff]
    %v86 = vld [vmem:[#allocation7 + $0x20] sm:$0xff]
    %v87 = vld [vmem:[#allocation7 + $0x28] sm:$0xff]
    %v88 = vld [vmem:[#allocation7 + $0x30] sm:$0xff]
    %v89 = vld [vmem:[#allocation7 + $0x38] sm:$0xff]
    %v90 = vld [vmem:[#allocation7 + $0x40] sm:$0xff]
    %v91 = vld [vmem:[#allocation7 + $0x48] sm:$0xff]
    %v92 = vld [vmem:[#allocation7 + $0x50] sm:$0xff]
    %v93 = vld [vmem:[#allocation7 + $0x58] sm:$0xff]
    %v94 = vld [vmem:[#allocation7 + $0x60] sm:$0xff]
    %v95 = vld [vmem:[#allocation7 + $0x68] sm:$0xff]
    %v96 = vld [vmem:[#allocation7 + $0x70] sm:$0xff]
    %v97 = vld [vmem:[#allocation7 + $0x78] sm:$0xff]
    %v98 = vld [vmem:[#allocation7 + $0x80] sm:$0xff]
    %v99 = vld [vmem:[#allocation7 + $0x88] sm:$0xff]
    %v100 = vld [vmem:[#allocation7 + $0x90] sm:$0xff]
    %v101 = vld [vmem:[#allocation7 + $0x98] sm:$0xff]
    %v102 = vld [vmem:[#allocation7 + $0xa0] sm:$0xff]
    %v103 = vld [vmem:[#allocation7 + $0xa8] sm:$0xff]
    %v104 = vld [vmem:[#allocation7 + $0xb0] sm:$0xff]
    %v105 = vld [vmem:[#allocation7 + $0xb8] sm:$0xff]
    %v106 = vld [vmem:[#allocation7 + $0xc0] sm:$0xff]
    %v107 = vld [vmem:[#allocation7 + $0xc8] sm:$0xff]
    %v108 = vld [vmem:[#allocation7 + $0xd0] sm:$0xff]
    %v109 = vld [vmem:[#allocation7 + $0xd8] sm:$0xff]
    %v110 = vld [vmem:[#allocation7 + $0xe0] sm:$0xff]
    %v111 = vld [vmem:[#allocation7 + $0xe8] sm:$0xff]
    %v112 = vld [vmem:[#allocation7 + $0xf0] sm:$0xff]
    %v113 = vld [vmem:[#allocation7 + $0xf8] sm:$0xff]
    %v114 = vld [vmem:[%s3] sm:$0xf]
    %v116 = vlaneseq
    %v117 = vshrl.u32 %v116, 7
    %v118 = vsub.s32 0, %v117
    %v119 = vrot.slane %v114, %v118
    %v120 = vlaneseq
    %v121 = vshrl.u32 %v120, 7
    %v122 = vsub.s32 1, %v121
    %v123 = vrot.slane %v114, %v122
    %v124 = vlaneseq
    %v125 = vshrl.u32 %v124, 7
    %v126 = vsub.s32 2, %v125
    %v127 = vrot.slane %v114, %v126
    %v128 = vlaneseq
    %v129 = vshrl.u32 %v128, 7
    %v130 = vsub.s32 3, %v129
    %v131 = vrot.slane %v114, %v130
    %v138 = vunpack.c.l.b16 %v80
    %v139 = vunpack.c.l.b16 %v81
    %v140 = vpack.c.b16 %v139, %v138
    %v174 = vunpack.c.l.b16 %v82
    %v175 = vunpack.c.h.b16 %v82
    %v176 = vunpack.c.l.b16 %v83
    %v177 = vunpack.c.h.b16 %v83
    %v178 = vunpack.c.l.b16 %v84
    %v179 = vunpack.c.h.b16 %v84
    %v180 = vunpack.c.l.b16 %v85
    %v181 = vunpack.c.h.b16 %v85
    %v182 = vunpack.c.l.b16 %v86
    %v183 = vunpack.c.h.b16 %v86
    %v184 = vunpack.c.l.b16 %v87
    %v185 = vunpack.c.h.b16 %v87
    %v186 = vunpack.c.l.b16 %v88
    %v187 = vunpack.c.h.b16 %v88
    %v188 = vunpack.c.l.b16 %v89
    %v189 = vunpack.c.h.b16 %v89
    %v190 = vunpack.c.l.b16 %v90
    %v191 = vunpack.c.h.b16 %v90
    %v192 = vunpack.c.l.b16 %v91
    %v193 = vunpack.c.h.b16 %v91
    %v194 = vunpack.c.l.b16 %v92
    %v195 = vunpack.c.h.b16 %v92
    %v196 = vunpack.c.l.b16 %v93
    %v197 = vunpack.c.h.b16 %v93
    %v198 = vunpack.c.l.b16 %v94
    %v199 = vunpack.c.h.b16 %v94
    %v200 = vunpack.c.l.b16 %v95
    %v201 = vunpack.c.h.b16 %v95
    %v202 = vunpack.c.l.b16 %v96
    %v203 = vunpack.c.h.b16 %v96
    %v204 = vunpack.c.l.b16 %v97
    %v205 = vunpack.c.h.b16 %v97
    %v206 = vunpack.c.l.b16 %v98
    %v207 = vunpack.c.h.b16 %v98
    %v208 = vunpack.c.l.b16 %v99
    %v209 = vunpack.c.h.b16 %v99
    %v210 = vunpack.c.l.b16 %v100
    %v211 = vunpack.c.h.b16 %v100
    %v212 = vunpack.c.l.b16 %v101
    %v213 = vunpack.c.h.b16 %v101
    %v214 = vunpack.c.l.b16 %v102
    %v215 = vunpack.c.h.b16 %v102
    %v216 = vunpack.c.l.b16 %v103
    %v217 = vunpack.c.h.b16 %v103
    %v218 = vunpack.c.l.b16 %v104
    %v219 = vunpack.c.h.b16 %v104
    %v220 = vunpack.c.l.b16 %v105
    %v221 = vunpack.c.h.b16 %v105
    %v222 = vunpack.c.l.b16 %v106
    %v223 = vunpack.c.h.b16 %v106
    %v224 = vunpack.c.l.b16 %v107
    %v225 = vunpack.c.h.b16 %v107
    %v226 = vunpack.c.l.b16 %v108
    %v227 = vunpack.c.h.b16 %v108
    %v228 = vunpack.c.l.b16 %v109
    %v229 = vunpack.c.h.b16 %v109
    %v230 = vunpack.c.l.b16 %v110
    %v231 = vunpack.c.h.b16 %v110
    %v232 = vunpack.c.l.b16 %v111
    %v233 = vunpack.c.h.b16 %v111
    %v234 = vunpack.c.l.b16 %v112
    %v235 = vunpack.c.h.b16 %v112
    %v236 = vunpack.c.l.b16 %v113
    %v237 = vunpack.c.h.b16 %v113
    %v238 = vpack.c.b16 %v178, %v174
    %v239 = vpack.c.b16 %v179, %v175
    %v240 = vpack.c.b16 %v180, %v176
    %v241 = vpack.c.b16 %v181, %v177
    %v242 = vpack.c.b16 %v186, %v182
    %v243 = vpack.c.b16 %v187, %v183
    %v244 = vpack.c.b16 %v188, %v184
    %v245 = vpack.c.b16 %v189, %v185
    %v246 = vpack.c.b16 %v194, %v190
    %v247 = vpack.c.b16 %v195, %v191
    %v248 = vpack.c.b16 %v196, %v192
    %v249 = vpack.c.b16 %v197, %v193
    %v250 = vpack.c.b16 %v202, %v198
    %v251 = vpack.c.b16 %v203, %v199
    %v252 = vpack.c.b16 %v204, %v200
    %v253 = vpack.c.b16 %v205, %v201
    %v254 = vpack.c.b16 %v210, %v206
    %v255 = vpack.c.b16 %v211, %v207
    %v256 = vpack.c.b16 %v212, %v208
    %v257 = vpack.c.b16 %v213, %v209
    %v258 = vpack.c.b16 %v218, %v214
    %v259 = vpack.c.b16 %v219, %v215
    %v260 = vpack.c.b16 %v220, %v216
    %v261 = vpack.c.b16 %v221, %v217
    %v262 = vpack.c.b16 %v226, %v222
    %v263 = vpack.c.b16 %v227, %v223
    %v264 = vpack.c.b16 %v228, %v224
    %v265 = vpack.c.b16 %v229, %v225
    %v266 = vpack.c.b16 %v234, %v230
    %v267 = vpack.c.b16 %v235, %v231
    %v268 = vpack.c.b16 %v236, %v232
    %v269 = vpack.c.b16 %v237, %v233
    %302 = vmatprep.subr.bf16.mxu0 %v239
    %303 = vmatpush1.bf16.msra.mxu0 %v238
    %304 = vmatprep.subr.bf16.mxu0 %v243
    %305 = vmatpush1.bf16.msra.mxu0 %v242
    %306 = vmatprep.subr.bf16.mxu0 %v247
    %307 = vmatpush1.bf16.msra.mxu0 %v246
    %308 = vmatprep.subr.bf16.mxu0 %v251
    %309 = vmatpush1.bf16.msra.mxu0 %v250
    %310 = vmatprep.subr.bf16.mxu0 %v255
    %311 = vmatpush1.bf16.msra.mxu0 %v254
    %312 = vmatprep.subr.bf16.mxu0 %v259
    %313 = vmatpush1.bf16.msra.mxu0 %v258
    %314 = vmatprep.subr.bf16.mxu0 %v263
    %315 = vmatpush1.bf16.msra.mxu0 %v262
    %316 = vmatprep.subr.bf16.mxu0 %v267
    %317 = vmatpush1.bf16.msra.mxu0 %v266
    %318 = vmatprep.subr.bf16.mxu0 0
    %319 = vmatpush1.bf16.msra.mxu0 0
    %320 = vmatprep.subr.bf16.mxu0 0
    %321 = vmatpush1.bf16.msra.mxu0 0
    %322 = vmatprep.subr.bf16.mxu0 0
    %323 = vmatpush1.bf16.msra.mxu0 0
    %324 = vmatprep.subr.bf16.mxu0 0
    %325 = vmatpush1.bf16.msra.mxu0 0
    %326 = vmatprep.subr.bf16.mxu0 0
    %327 = vmatpush1.bf16.msra.mxu0 0
    %328 = vmatprep.subr.bf16.mxu0 0
    %329 = vmatpush1.bf16.msra.mxu0 0
    %330 = vmatprep.subr.bf16.mxu0 0
    %331 = vmatpush1.bf16.msra.mxu0 0
    %332 = vmatprep.subr.bf16.mxu0 0
    %333 = vmatpush1.bf16.msra.mxu0 0
    %334 = vmatprep.mubr.bf16.mxu0 0
    %335 = vmatmul.mubr.bf16.gmra.mrb[0].mxu0 %v140
    %v336 = vpop.f32.mrb[0].mxu0
    %v337 = vadd.f32 %v119, %v336
    %v338 = vpop.f32.mrb[0].mxu0
    %v339 = vadd.f32 %v123, %v338
    %v340 = vpop.f32.mrb[0].mxu0
    %v341 = vadd.f32 %v119, %v340
    %v342 = vpop.f32.mrb[0].mxu0
    %v343 = vadd.f32 %v123, %v342
    %344 = vdwg.mxu0
    %345 = vmatprep.subr.bf16.mxu0 %v241
    %346 = vmatpush1.bf16.msra.mxu0 %v240
    %347 = vmatprep.subr.bf16.mxu0 %v245
    %348 = vmatpush1.bf16.msra.mxu0 %v244
    %349 = vmatprep.subr.bf16.mxu0 %v249
    %350 = vmatpush1.bf16.msra.mxu0 %v248
    %351 = vmatprep.subr.bf16.mxu0 %v253
    %352 = vmatpush1.bf16.msra.mxu0 %v252
    %353 = vmatprep.subr.bf16.mxu0 %v257
    %354 = vmatpush1.bf16.msra.mxu0 %v256
    %355 = vmatprep.subr.bf16.mxu0 %v261
    %356 = vmatpush1.bf16.msra.mxu0 %v260
    %357 = vmatprep.subr.bf16.mxu0 %v265
    %358 = vmatpush1.bf16.msra.mxu0 %v264
    %359 = vmatprep.subr.bf16.mxu0 %v269
    %360 = vmatpush1.bf16.msra.mxu0 %v268
    %361 = vmatprep.subr.bf16.mxu0 0
    %362 = vmatpush1.bf16.msra.mxu0 0
    %363 = vmatprep.subr.bf16.mxu0 0
    %364 = vmatpush1.bf16.msra.mxu0 0
    %365 = vmatprep.subr.bf16.mxu0 0
    %366 = vmatpush1.bf16.msra.mxu0 0
    %367 = vmatprep.subr.bf16.mxu0 0
    %368 = vmatpush1.bf16.msra.mxu0 0
    %369 = vmatprep.subr.bf16.mxu0 0
    %370 = vmatpush1.bf16.msra.mxu0 0
    %371 = vmatprep.subr.bf16.mxu0 0
    %372 = vmatpush1.bf16.msra.mxu0 0
    %373 = vmatprep.subr.bf16.mxu0 0
    %374 = vmatpush1.bf16.msra.mxu0 0
    %375 = vmatprep.subr.bf16.mxu0 0
    %376 = vmatpush1.bf16.msra.mxu0 0
    %377 = vmatprep.mubr.bf16.mxu0 0
    %378 = vmatmul.mubr.bf16.gmra.mrb[0].mxu0 %v140
    %v379 = vpop.f32.mrb[0].mxu0
    %v380 = vadd.f32 %v127, %v379
    %v381 = vpop.f32.mrb[0].mxu0
    %v382 = vadd.f32 %v131, %v381
    %v383 = vpop.f32.mrb[0].mxu0
    %v384 = vadd.f32 %v127, %v383
    %v385 = vpop.f32.mrb[0].mxu0
    %v386 = vadd.f32 %v131, %v385
    %387 = vdwg.mxu0
    %v388 = vmax.f32 %v337, 0.0
    %v389 = vmax.f32 %v339, 0.0
    %v390 = vmax.f32 %v380, 0.0
    %v391 = vmax.f32 %v382, 0.0
    %v392 = vmax.f32 %v341, 0.0
    %v393 = vmax.f32 %v343, 0.0
    %v394 = vmax.f32 %v384, 0.0
    %v395 = vmax.f32 %v386, 0.0
    %v396 = vpack.c.bf16 %v392, %v388
    %v397 = vpack.c.bf16 %v393, %v389
    %v398 = vpack.c.bf16 %v394, %v390
    %v399 = vpack.c.bf16 %v395, %v391
    %v400 = vld [vmem:[#allocation8] sm:$0xf]
    %v401 = vld [vmem:[#allocation8 + $0x4] sm:$0xf]
    %v402 = vld [vmem:[#allocation8 + $0x8] sm:$0xf]
    %v403 = vld [vmem:[#allocation8 + $0xc] sm:$0xf]
    %v404 = vld [vmem:[#allocation8 + $0x10] sm:$0xf]
    %v405 = vld [vmem:[#allocation8 + $0x14] sm:$0xf]
    %v406 = vld [vmem:[#allocation8 + $0x18] sm:$0xf]
    %v407 = vld [vmem:[#allocation8 + $0x1c] sm:$0xf]
    %v408 = vld [vmem:[#allocation8 + $0x20] sm:$0xf]
    %v409 = vld [vmem:[#allocation8 + $0x24] sm:$0xf]
    %v410 = vld [vmem:[#allocation8 + $0x28] sm:$0xf]
    %v411 = vld [vmem:[#allocation8 + $0x2c] sm:$0xf]
    %v412 = vld [vmem:[#allocation8 + $0x30] sm:$0xf]
    %v413 = vld [vmem:[#allocation8 + $0x34] sm:$0xf]
    %v414 = vld [vmem:[#allocation8 + $0x38] sm:$0xf]
    %v415 = vld [vmem:[#allocation8 + $0x3c] sm:$0xf]
    %v416 = vld [vmem:[#allocation8 + $0x40] sm:$0xf]
    %v417 = vld [vmem:[#allocation8 + $0x44] sm:$0xf]
    %v418 = vld [vmem:[#allocation8 + $0x48] sm:$0xf]
    %v419 = vld [vmem:[#allocation8 + $0x4c] sm:$0xf]
    %v420 = vld [vmem:[#allocation8 + $0x50] sm:$0xf]
    %v421 = vld [vmem:[#allocation8 + $0x54] sm:$0xf]
    %v422 = vld [vmem:[#allocation8 + $0x58] sm:$0xf]
    %v423 = vld [vmem:[#allocation8 + $0x5c] sm:$0xf]
    %v424 = vld [vmem:[#allocation8 + $0x60] sm:$0xf]
    %v425 = vld [vmem:[#allocation8 + $0x64] sm:$0xf]
    %v426 = vld [vmem:[#allocation8 + $0x68] sm:$0xf]
    %v427 = vld [vmem:[#allocation8 + $0x6c] sm:$0xf]
    %v428 = vld [vmem:[#allocation8 + $0x70] sm:$0xf]
    %v429 = vld [vmem:[#allocation8 + $0x74] sm:$0xf]
    %v430 = vld [vmem:[#allocation8 + $0x78] sm:$0xf]
    %v431 = vld [vmem:[#allocation8 + $0x7c] sm:$0xf]
    %v432 = vld [vmem:[#allocation8 + $0x80] sm:$0xf]
    %v433 = vld [vmem:[#allocation8 + $0x84] sm:$0xf]
    %v434 = vld [vmem:[#allocation8 + $0x88] sm:$0xf]
    %v435 = vld [vmem:[#allocation8 + $0x8c] sm:$0xf]
    %v436 = vld [vmem:[#allocation8 + $0x90] sm:$0xf]
    %v437 = vld [vmem:[#allocation8 + $0x94] sm:$0xf]
    %v438 = vld [vmem:[#allocation8 + $0x98] sm:$0xf]
    %v439 = vld [vmem:[#allocation8 + $0x9c] sm:$0xf]
    %v440 = vld [vmem:[#allocation8 + $0xa0] sm:$0xf]
    %v441 = vld [vmem:[#allocation8 + $0xa4] sm:$0xf]
    %v442 = vld [vmem:[#allocation8 + $0xa8] sm:$0xf]
    %v443 = vld [vmem:[#allocation8 + $0xac] sm:$0xf]
    %v444 = vld [vmem:[#allocation8 + $0xb0] sm:$0xf]
    %v445 = vld [vmem:[#allocation8 + $0xb4] sm:$0xf]
    %v446 = vld [vmem:[#allocation8 + $0xb8] sm:$0xf]
    %v447 = vld [vmem:[#allocation8 + $0xbc] sm:$0xf]
    %v448 = vld [vmem:[#allocation8 + $0xc0] sm:$0xf]
    %v449 = vld [vmem:[#allocation8 + $0xc4] sm:$0xf]
    %v450 = vld [vmem:[#allocation8 + $0xc8] sm:$0xf]
    %v451 = vld [vmem:[#allocation8 + $0xcc] sm:$0xf]
    %v452 = vld [vmem:[#allocation8 + $0xd0] sm:$0xf]
    %v453 = vld [vmem:[#allocation8 + $0xd4] sm:$0xf]
    %v454 = vld [vmem:[#allocation8 + $0xd8] sm:$0xf]
    %v455 = vld [vmem:[#allocation8 + $0xdc] sm:$0xf]
    %v456 = vld [vmem:[#allocation8 + $0xe0] sm:$0xf]
    %v457 = vld [vmem:[#allocation8 + $0xe4] sm:$0xf]
    %v458 = vld [vmem:[#allocation8 + $0xe8] sm:$0xf]
    %v459 = vld [vmem:[#allocation8 + $0xec] sm:$0xf]
    %v460 = vld [vmem:[#allocation8 + $0xf0] sm:$0xf]
    %v461 = vld [vmem:[#allocation8 + $0xf4] sm:$0xf]
    %v462 = vld [vmem:[#allocation8 + $0xf8] sm:$0xf]
    %v463 = vld [vmem:[#allocation8 + $0xfc] sm:$0xf]
    %v464 = vld [vmem:[%s5] sm:$0x1]
    %v466 = vlaneseq
    %v467 = vshrl.u32 %v466, 7
    %v468 = vsub.s32 0, %v467
    %v469 = vrot.slane %v464, %v468
    %v535 = vunpack.c.l.b16 %v400
    %v536 = vunpack.c.l.b16 %v401
    %v537 = vunpack.c.l.b16 %v402
    %v538 = vunpack.c.l.b16 %v403
    %v539 = vunpack.c.l.b16 %v404
    %v540 = vunpack.c.l.b16 %v405
    %v541 = vunpack.c.l.b16 %v406
    %v542 = vunpack.c.l.b16 %v407
    %v543 = vunpack.c.l.b16 %v408
    %v544 = vunpack.c.l.b16 %v409
    %v545 = vunpack.c.l.b16 %v410
    %v546 = vunpack.c.l.b16 %v411
    %v547 = vunpack.c.l.b16 %v412
    %v548 = vunpack.c.l.b16 %v413
    %v549 = vunpack.c.l.b16 %v414
    %v550 = vunpack.c.l.b16 %v415
    %v551 = vunpack.c.l.b16 %v416
    %v552 = vunpack.c.l.b16 %v417
    %v553 = vunpack.c.l.b16 %v418
    %v554 = vunpack.c.l.b16 %v419
    %v555 = vunpack.c.l.b16 %v420
    %v556 = vunpack.c.l.b16 %v421
    %v557 = vunpack.c.l.b16 %v422
    %v558 = vunpack.c.l.b16 %v423
    %v559 = vunpack.c.l.b16 %v424
    %v560 = vunpack.c.l.b16 %v425
    %v561 = vunpack.c.l.b16 %v426
    %v562 = vunpack.c.l.b16 %v427
    %v563 = vunpack.c.l.b16 %v428
    %v564 = vunpack.c.l.b16 %v429
    %v565 = vunpack.c.l.b16 %v430
    %v566 = vunpack.c.l.b16 %v431
    %v567 = vunpack.c.l.b16 %v432
    %v568 = vunpack.c.l.b16 %v433
    %v569 = vunpack.c.l.b16 %v434
    %v570 = vunpack.c.l.b16 %v435
    %v571 = vunpack.c.l.b16 %v436
    %v572 = vunpack.c.l.b16 %v437
    %v573 = vunpack.c.l.b16 %v438
    %v574 = vunpack.c.l.b16 %v439
    %v575 = vunpack.c.l.b16 %v440
    %v576 = vunpack.c.l.b16 %v441
    %v577 = vunpack.c.l.b16 %v442
    %v578 = vunpack.c.l.b16 %v443
    %v579 = vunpack.c.l.b16 %v444
    %v580 = vunpack.c.l.b16 %v445
    %v581 = vunpack.c.l.b16 %v446
    %v582 = vunpack.c.l.b16 %v447
    %v583 = vunpack.c.l.b16 %v448
    %v584 = vunpack.c.l.b16 %v449
    %v585 = vunpack.c.l.b16 %v450
    %v586 = vunpack.c.l.b16 %v451
    %v587 = vunpack.c.l.b16 %v452
    %v588 = vunpack.c.l.b16 %v453
    %v589 = vunpack.c.l.b16 %v454
    %v590 = vunpack.c.l.b16 %v455
    %v591 = vunpack.c.l.b16 %v456
    %v592 = vunpack.c.l.b16 %v457
    %v593 = vunpack.c.l.b16 %v458
    %v594 = vunpack.c.l.b16 %v459
    %v595 = vunpack.c.l.b16 %v460
    %v596 = vunpack.c.l.b16 %v461
    %v597 = vunpack.c.l.b16 %v462
    %v598 = vunpack.c.l.b16 %v463
    %v599 = vpack.c.b16 %v536, %v535
    %v600 = vpack.c.b16 %v538, %v537
    %v601 = vpack.c.b16 %v540, %v539
    %v602 = vpack.c.b16 %v542, %v541
    %v603 = vpack.c.b16 %v544, %v543
    %v604 = vpack.c.b16 %v546, %v545
    %v605 = vpack.c.b16 %v548, %v547
    %v606 = vpack.c.b16 %v550, %v549
    %v607 = vpack.c.b16 %v552, %v551
    %v608 = vpack.c.b16 %v554, %v553
    %v609 = vpack.c.b16 %v556, %v555
    %v610 = vpack.c.b16 %v558, %v557
    %v611 = vpack.c.b16 %v560, %v559
    %v612 = vpack.c.b16 %v562, %v561
    %v613 = vpack.c.b16 %v564, %v563
    %v614 = vpack.c.b16 %v566, %v565
    %v615 = vpack.c.b16 %v568, %v567
    %v616 = vpack.c.b16 %v570, %v569
    %v617 = vpack.c.b16 %v572, %v571
    %v618 = vpack.c.b16 %v574, %v573
    %v619 = vpack.c.b16 %v576, %v575
    %v620 = vpack.c.b16 %v578, %v577
    %v621 = vpack.c.b16 %v580, %v579
    %v622 = vpack.c.b16 %v582, %v581
    %v623 = vpack.c.b16 %v584, %v583
    %v624 = vpack.c.b16 %v586, %v585
    %v625 = vpack.c.b16 %v588, %v587
    %v626 = vpack.c.b16 %v590, %v589
    %v627 = vpack.c.b16 %v592, %v591
    %v628 = vpack.c.b16 %v594, %v593
    %v629 = vpack.c.b16 %v596, %v595
    %v630 = vpack.c.b16 %v598, %v597
    %663 = vmatprep.subr.bf16.mxu0 0
    %664 = vmatpush1.bf16.msra.mxu0 %v599
    %665 = vmatprep.subr.bf16.mxu0 0
    %666 = vmatpush1.bf16.msra.mxu0 %v600
    %667 = vmatprep.subr.bf16.mxu0 0
    %668 = vmatpush1.bf16.msra.mxu0 %v601
    %669 = vmatprep.subr.bf16.mxu0 0
    %670 = vmatpush1.bf16.msra.mxu0 %v602
    %671 = vmatprep.subr.bf16.mxu0 0
    %672 = vmatpush1.bf16.msra.mxu0 %v603
    %673 = vmatprep.subr.bf16.mxu0 0
    %674 = vmatpush1.bf16.msra.mxu0 %v604
    %675 = vmatprep.subr.bf16.mxu0 0
    %676 = vmatpush1.bf16.msra.mxu0 %v605
    %677 = vmatprep.subr.bf16.mxu0 0
    %678 = vmatpush1.bf16.msra.mxu0 %v606
    %679 = vmatprep.subr.bf16.mxu0 0
    %680 = vmatpush1.bf16.msra.mxu0 %v607
    %681 = vmatprep.subr.bf16.mxu0 0
    %682 = vmatpush1.bf16.msra.mxu0 %v608
    %683 = vmatprep.subr.bf16.mxu0 0
    %684 = vmatpush1.bf16.msra.mxu0 %v609
    %685 = vmatprep.subr.bf16.mxu0 0
    %686 = vmatpush1.bf16.msra.mxu0 %v610
    %687 = vmatprep.subr.bf16.mxu0 0
    %688 = vmatpush1.bf16.msra.mxu0 %v611
    %689 = vmatprep.subr.bf16.mxu0 0
    %690 = vmatpush1.bf16.msra.mxu0 %v612
    %691 = vmatprep.subr.bf16.mxu0 0
    %692 = vmatpush1.bf16.msra.mxu0 %v613
    %693 = vmatprep.subr.bf16.mxu0 0
    %694 = vmatpush1.bf16.msra.mxu0 %v614
    %695 = vmatprep.mubr.bf16.mxu0 %v397
    %696 = vmatmul.mubr.bf16.gmra.mrb[0].mxu0 %v396
    %v697 = vpop.f32.mrb[0].mxu0
    %v698 = vadd.f32 %v469, %v697
    %v699 = vpop.f32.mrb[0].mxu0
    %v700 = vpop.f32.mrb[0].mxu0
    %v701 = vadd.f32 %v469, %v700
    %v702 = vpop.f32.mrb[0].mxu0
    %703 = vdwg.mxu0
    %704 = vmatprep.subr.bf16.mxu0 0
    %705 = vmatpush1.bf16.msra.mxu0 %v615
    %706 = vmatprep.subr.bf16.mxu0 0
    %707 = vmatpush1.bf16.msra.mxu0 %v616
    %708 = vmatprep.subr.bf16.mxu0 0
    %709 = vmatpush1.bf16.msra.mxu0 %v617
    %710 = vmatprep.subr.bf16.mxu0 0
    %711 = vmatpush1.bf16.msra.mxu0 %v618
    %712 = vmatprep.subr.bf16.mxu0 0
    %713 = vmatpush1.bf16.msra.mxu0 %v619
    %714 = vmatprep.subr.bf16.mxu0 0
    %715 = vmatpush1.bf16.msra.mxu0 %v620
    %716 = vmatprep.subr.bf16.mxu0 0
    %717 = vmatpush1.bf16.msra.mxu0 %v621
    %718 = vmatprep.subr.bf16.mxu0 0
    %719 = vmatpush1.bf16.msra.mxu0 %v622
    %720 = vmatprep.subr.bf16.mxu0 0
    %721 = vmatpush1.bf16.msra.mxu0 %v623
    %722 = vmatprep.subr.bf16.mxu0 0
    %723 = vmatpush1.bf16.msra.mxu0 %v624
    %724 = vmatprep.subr.bf16.mxu0 0
    %725 = vmatpush1.bf16.msra.mxu0 %v625
    %726 = vmatprep.subr.bf16.mxu0 0
    %727 = vmatpush1.bf16.msra.mxu0 %v626
    %728 = vmatprep.subr.bf16.mxu0 0
    %729 = vmatpush1.bf16.msra.mxu0 %v627
    %730 = vmatprep.subr.bf16.mxu0 0
    %731 = vmatpush1.bf16.msra.mxu0 %v628
    %732 = vmatprep.subr.bf16.mxu0 0
    %733 = vmatpush1.bf16.msra.mxu0 %v629
    %734 = vmatprep.subr.bf16.mxu0 0
    %735 = vmatpush1.bf16.msra.mxu0 %v630
    %736 = vmatprep.mubr.bf16.mxu0 %v399
    %737 = vmatmul.mubr.bf16.gmra.mrb[0].mxu0 %v398
    %v738 = vpop.f32.mrb[0].mxu0
    %v739 = vadd.f32 %v698, %v738
    %v740 = vpop.f32.mrb[0].mxu0
    %v741 = vpop.f32.mrb[0].mxu0
    %v742 = vadd.f32 %v701, %v741
    %v743 = vpop.f32.mrb[0].mxu0
    %744 = vdwg.mxu0
    %v745 = vld [vmem:[#allocation5] sm:$0xff]
    %v746 = vld [vmem:[#allocation5 + $0x8] sm:$0xff]
    %vm747 = vcmp.ge.u32.totalorder %v745, 858993459
    %vm748 = vcmp.ge.u32.totalorder %v746, 858993459
    %v749 = vmul.f32 %v739, 1.25
    %v750 = vmul.f32 %v742, 1.25
    %v751 = vsel %vm747, %v749, 0.0
    %v752 = vsel %vm748, %v750, 0.0
    %753 = vst [vmem:[#allocation10] sm:$0xff] %v751
    %754 = vst [vmem:[#allocation10 + $0x8] sm:$0xff] %v752
    // Predicated region
    $region42: #{tpu_custom_call.1} parent=1 // pred_check
      _
    $region43: #{tpu_custom_call.1} parent=1 // pred_check_branch
      %756 = sbr.rel (0) target = $region45
    $region44: #{tpu_custom_call.1} parent=1 // pred_region
      %s758 = ssub.s32 256, 256
      %759 = vsyncadd [#allocation4], %s758
      %s760 = sshll.u32 [#allocation10], 4
      %s761 = int_to_ptr.vmem [resolvable:$true] %s760
      %766 = dma.vmem_to_hbm [thread:$0]  %s761, 256, %s6, [#allocation4], 128, 128, 8
    $region45: #{tpu_custom_call.1} parent=1 // pred_fallthru
      _
    // Predicated region
    $region46: #{tpu_custom_call.1} parent=1 // pred_check
      _
    $region47: #{tpu_custom_call.1} parent=1 // pred_check_branch
      %768 = sbr.rel (0) target = $region49
    $region48: #{tpu_custom_call.1} parent=1 // pred_region
      %769 = dma.done [#allocation4], 256
    $region49: #{tpu_custom_call.1} parent=1 // pred_fallthru
      _
    %770 = vsyncpa [#allocation3], 1
    %771 = vsyncpa [#allocation6], 1
    %772 = vsyncpa [#allocation9], 1
    %773 = vsyncpa [#allocation4], 1

</llo_original>
